<compile_context>
chip_gen: v6e
topology: v6e:2x2x1
jax: 0.10.0
libtpu: 0.0.40
codegen_flags: <defaults>
</compile_context>

<pallas_src>
import numpy as np
import jax
import jax.numpy as jnp
from jax import lax
from jax.experimental import pallas as pl
from jax.experimental.pallas import tpu as pltpu


def _round_up(x, m):
    return ((x + m - 1) // m) * m


def _largest_divisor_leq(n, cap):
    cap = max(1, min(n, cap))
    for d in range(cap, 0, -1):
        if n % d == 0:
            return d
    return 1


def _vmem_budget_bytes():
    """~75% of physical VMEM: ~96 MiB on v5e/v6e (128 MiB), ~48 MiB on v7x (64 MiB)."""
    try:
        cap = int(pltpu.get_tpu_info().vmem_capacity_bytes)
    except Exception:
        cap = 64 * 1024 * 1024      # conservative fallback (v7x-sized VMEM)
    return (cap * 3) // 4


# ---------------------------------------------------------------------------
# Kernels
# ---------------------------------------------------------------------------

def _patch_embed_kernel_fullk(x_ref, w_ref, pos_ref, o_ref):
    # Common path: one K step, no accumulator scratch / zero-init / re-read.
    # x_ref:   (tile_b, n_patches, K)   patch pixels (compute dtype, bf16 by default)
    # w_ref:   (K, N)                   flattened conv weight (compute dtype)
    # pos_ref: (n_patches, N)           pos-embed + conv bias (compute dtype)
    # o_ref:   (tile_b, n_patches, N)   output tile
    w = w_ref[...]
    pos = pos_ref[...].astype(jnp.float32)
    for bi in range(x_ref.shape[0]):                     # static tile_b, unrolled
        acc = jnp.dot(x_ref[bi], w, preferred_element_type=jnp.float32)
        o_ref[bi] = (acc + pos).astype(o_ref.dtype)
    # TODO(synk): dropout_rate is 0.0 in this config -> identity; a non-zero rate would need
    # pltpu.prng_seed / pltpu.prng_random_bits masking here.


def _patch_embed_kernel_ksplit(x_ref, w_ref, pos_ref, o_ref, acc_ref):
    # Huge-K path (large 3-D patch_dim). Grid = (batch, K tiles); wrapper guarantees num_k >= 2.
    # x_ref: (1, n_patches, tile_k); w_ref: (tile_k, N); pos_ref: (n_patches, N)
    # o_ref: (1, n_patches, N); acc_ref: (n_patches, N) f32 scratch.
    k = pl.program_id(1)
    nk = pl.num_programs(1)
    part = jnp.dot(x_ref[0], w_ref[...], preferred_element_type=jnp.float32)

    @pl.when(k == 0)
    def _():
        acc_ref[...] = part                              # init = first partial (no zero-fill pass)

    @pl.when(jnp.logical_and(k > 0, k < nk - 1))
    def _():
        acc_ref[...] += part

    @pl.when(k == nk - 1)                                # nk >= 2, so disjoint from k == 0
    def _():
        o_ref[0] = (acc_ref[...] + part
                    + pos_ref[...].astype(jnp.float32)).astype(o_ref.dtype)


# ---------------------------------------------------------------------------
# Forward wrapper
# ---------------------------------------------------------------------------

def patch_embedding_forward(x, conv_w, conv_b, pos_embed, patch_size, *, compute_dtype=None):
    """Forward of MONAI PatchEmbeddingBlock (patch_embed='conv', pos_embed='learnable',
    dropout_rate=0.0) for 2-D or 3-D inputs.

    x: (B, C, *spatial).  conv_w: (hidden, C, *patch).  conv_b: (hidden,).
    pos_embed: (1, n_patches, hidden).  Returns (B, n_patches, hidden) in x.dtype.
    compute_dtype: MXU operand dtype; defaults to bfloat16 (f32 accumulation + f32 pos add).
    """
    nd = x.ndim - 2
    ps = (patch_size,) * nd if isinstance(patch_size, int) else tuple(patch_size)
    B, C = int(x.shape[0]), int(x.shape[1])
    spatial = x.shape[2:]
    for s, p in zip(spatial, ps):
        assert s % p == 0, "input size and patch size are not proper"
    grid_dims = tuple(s // p for s, p in zip(spatial, ps))
    n_patches = int(np.prod(grid_dims))
    K = int(C * np.prod(ps))
    N = int(conv_w.shape[0])
    out_dtype = x.dtype
    if compute_dtype is None:
        compute_dtype = jnp.bfloat16                     # default per perf review
    in_isz = jnp.dtype(compute_dtype).itemsize
    out_isz = jnp.dtype(out_dtype).itemsize
    pos_isz = in_isz

    # ---- patch extraction: ONE fused reshape/transpose/cast (single XLA copy of x) ----
    # TODO(synk): fuse this gather into the kernel via an NC(D)HW index_map to drop this copy.
    split_shape = (B, C) + tuple(v for gp in zip(grid_dims, ps) for v in gp)
    perm = (0,) + tuple(2 + 2 * i for i in range(nd)) + (1,) + tuple(3 + 2 * i for i in range(nd))
    xp = jnp.transpose(x.reshape(split_shape), perm).reshape(B, n_patches, K).astype(compute_dtype)

    w = conv_w.reshape(N, K).T.astype(compute_dtype)                        # (K, N)
    # conv bias folded into the position embedding (one fewer stream / VPU add per element);
    # shipped in the compute dtype (f32 only for the explicit-f32 path).
    pos = (pos_embed.reshape(n_patches, N).astype(jnp.float32)
           + conv_b.astype(jnp.float32)[None, :]).astype(compute_dtype)     # (n_patches, N)

    # ---- per-generation VMEM budget & tile selection ----
    budget = _vmem_budget_bytes()

    def single_block_bytes(tb):
        # everything is double-buffered by the BlockSpec pipeline
        return (2 * tb * n_patches * K * in_isz          # x
                + 2 * K * N * in_isz                     # w  (resident: constant block index)
                + 2 * n_patches * N * pos_isz            # pos (resident)
                + 2 * tb * n_patches * N * out_isz)      # out

    target_rows = 1024 if budget >= (96 << 20) else 512
    tile_b = _largest_divisor_leq(B, max(1, target_rows // max(1, n_patches)))
    if B >= 2:
        # keep >= 2 M-blocks so ("parallel",) can shard across both TensorCores on v7x.
        tile_b = min(tile_b, _largest_divisor_leq(B, max(1, B // 2)))
    while tile_b > 1 and single_block_bytes(tile_b) > budget:
        tile_b = _largest_divisor_leq(B, tile_b - 1)

    if single_block_bytes(tile_b) <= budget:
        # ---------------- common path: full-K, full-N, no accumulator ----------------
        cost = pl.CostEstimate(
            flops=2 * B * n_patches * K * N,
            transcendentals=0,
            bytes_accessed=(B * n_patches * K * in_isz + K * N * in_isz
                            + n_patches * N * pos_isz + B * n_patches * N * out_isz))
        return pl.pallas_call(
            _patch_embed_kernel_fullk,
            out_shape=jax.ShapeDtypeStruct((B, n_patches, N), out_dtype),
            grid=(B // tile_b,),
            in_specs=[
                pl.BlockSpec((tile_b, n_patches, K), lambda i: (i, 0, 0)),
                pl.BlockSpec((K, N), lambda i: (0, 0)),
                pl.BlockSpec((n_patches, N), lambda i: (0, 0)),
            ],
            out_specs=pl.BlockSpec((tile_b, n_patches, N), lambda i: (i, 0, 0)),
            compiler_params=pltpu.CompilerParams(
                dimension_semantics=("parallel",),
                vmem_limit_bytes=budget),
            cost_estimate=cost,
        )(xp, w, pos)

    # ---------------- huge-K path (large 3-D patch_dim): split K, f32 accumulator -------------
    tile_b = 1
    fixed = (2 * n_patches * N * pos_isz + 2 * n_patches * N * out_isz
             + n_patches * N * 4)                                   # pos + out + acc scratch
    per_k = 2 * (n_patches + N) * in_isz                            # x-block + w-block per K unit
    tile_k = max(128, ((max(budget - fixed, per_k * 128) // per_k) // 128) * 128)
    tile_k = min(tile_k, _round_up(K, 128))
    K_pad = _round_up(K, tile_k)
    num_k = K_pad // tile_k                                         # >= 2 whenever this path runs
    if K_pad != K:                                                  # zero K-padding contributes 0
        xp = jnp.pad(xp, ((0, 0), (0, 0), (0, K_pad - K)))
        w = jnp.pad(w, ((0, K_pad - K), (0, 0)))

    cost = pl.CostEstimate(
        flops=2 * B * n_patches * K_pad * N,
        transcendentals=0,
        bytes_accessed=(B * n_patches * K_pad * in_isz              # x read once
                        + B * K_pad * N * in_isz                    # w re-read once per batch item
                        + n_patches * N * pos_isz + B * n_patches * N * out_isz))
    return pl.pallas_call(
        _patch_embed_kernel_ksplit,
        out_shape=jax.ShapeDtypeStruct((B, n_patches, N), out_dtype),
        grid=(B, num_k),
        in_specs=[
            pl.BlockSpec((1, n_patches, tile_k), lambda b, k: (b, 0, k)),
            pl.BlockSpec((tile_k, N), lambda b, k: (k, 0)),
            pl.BlockSpec((n_patches, N), lambda b, k: (0, 0)),
        ],
        out_specs=pl.BlockSpec((1, n_patches, N), lambda b, k: (b, 0, 0)),
        scratch_shapes=[pltpu.VMEM((n_patches, N), jnp.float32)],
        compiler_params=pltpu.CompilerParams(
            dimension_semantics=("parallel", "arbitrary"),
            vmem_limit_bytes=budget),
        cost_estimate=cost,
    )(xp, w, pos)


# ---------------------------------------------------------------------------
# Pure-JAX reference (independent: strided conv, as in the PyTorch module)
# ---------------------------------------------------------------------------

def reference_forward(x, conv_w, conv_b, pos_embed, patch_size):
    nd = x.ndim - 2
    ps = (patch_size,) * nd if isinstance(patch_size, int) else tuple(patch_size)
    dn = ("NCHW", "OIHW", "NCHW") if nd == 2 else ("NCDHW", "OIDHW", "NCDHW")
    y = lax.conv_general_dilated(x, conv_w, window_strides=ps, padding="VALID",
                                 dimension_numbers=dn,
                                 precision=jax.lax.Precision.HIGHEST)
    y = y + conv_b.reshape((1, -1) + (1,) * nd)
    Bv, hidden = y.shape[0], y.shape[1]
    y = y.reshape(Bv, hidden, -1).transpose(0, 2, 1)     # (B, n_patches, hidden)
    return y + pos_embed


if __name__ == "__main__":
    # ---- 2-D config: in_channels=4, img_size=16, patch_size=8, hidden_size=32, num_heads=4,
    #      patch_embed="conv", pos_embed="learnable", dropout_rate=0.0 ----
    B, C, H, W = 2, 4, 16, 16
    P = 8
    hidden = 32
    n_patches = (H // P) * (W // P)

    key = jax.random.PRNGKey(0)
    kx, kw, kb, kp = jax.random.split(key, 4)
    x = jax.random.normal(kx, (B, C, H, W), dtype=jnp.float32)
    conv_w = jax.random.normal(kw, (hidden, C, P, P), dtype=jnp.float32) * 0.02
    conv_b = jax.random.normal(kb, (hidden,), dtype=jnp.float32) * 0.01
    pos_embed = jnp.clip(
        jax.random.normal(kp, (1, n_patches, hidden), dtype=jnp.float32) * 0.02, -2.0, 2.0)

    ref = reference_forward(x, conv_w, conv_b, pos_embed, P)

    # Default path: bf16 MXU operands, f32 accumulation.
    fwd = jax.jit(lambda a, b, c, d: patch_embedding_forward(a, b, c, d, P))
    out = jax.block_until_ready(fwd(x, conv_w, conv_b, pos_embed))
    assert out.shape == (B, n_patches, hidden)
    np.testing.assert_allclose(np.asarray(out), np.asarray(ref), rtol=3e-2, atol=3e-2)

    # Explicit f32-operand path (reference conv runs at HIGHEST precision; Mosaic f32 matmul is
    # multi-pass -- expected error well below 1e-4 at this patch_dim).
    fwd32 = jax.jit(lambda a, b, c, d: patch_embedding_forward(
        a, b, c, d, P, compute_dtype=jnp.float32))
    out32 = jax.block_until_ready(fwd32(x, conv_w, conv_b, pos_embed))
    np.testing.assert_allclose(np.asarray(out32), np.asarray(ref), rtol=1e-4, atol=1e-4)

    # ---- small 3-D (spatial_dims=3) config: exercises the decoupled (batch, patch) tiling ----
    B3, C3, S3, P3, hid3 = 2, 2, 16, 8, 64
    np3 = (S3 // P3) ** 3
    k3x, k3w, k3b, k3p = jax.random.split(jax.random.PRNGKey(1), 4)
    x3 = jax.random.normal(k3x, (B3, C3, S3, S3, S3), dtype=jnp.float32)
    w3 = jax.random.normal(k3w, (hid3, C3, P3, P3, P3), dtype=jnp.float32) * 0.02
    b3 = jax.random.normal(k3b, (hid3,), dtype=jnp.float32) * 0.01
    p3 = jax.random.normal(k3p, (1, np3, hid3), dtype=jnp.float32) * 0.02
    ref3 = reference_forward(x3, w3, b3, p3, P3)
    fwd3 = jax.jit(lambda a, b, c, d: patch_embedding_forward(a, b, c, d, P3))
    out3 = jax.block_until_ready(fwd3(x3, w3, b3, p3))
    assert out3.shape == (B3, np3, hid3)
    np.testing.assert_allclose(np.asarray(out3), np.asarray(ref3), rtol=3e-2, atol=3e-2)

    print("KERNEL_OK")
</pallas_src>

<mosaic_0001>
module attributes {stable_mosaic.version = 11 : i64} {
  func.func @_patch_embed_kernel_fullk(%arg0: i32, %arg1: memref<1x4x256xbf16, #tpu.memory_space<vmem>>, %arg2: memref<256x32xbf16, #tpu.memory_space<vmem>>, %arg3: memref<4x32xbf16, #tpu.memory_space<vmem>>, %arg4: memref<1x4x32xf32, #tpu.memory_space<vmem>>) attributes {dimension_semantics = [#tpu.dimension_semantics<parallel>], iteration_bounds = array<i64: 2>, scalar_prefetch = 0 : i64, scratch_operands = 0 : i64, tpu.core_type = #tpu.core_type<tc>, window_params = [{transform_indices = @transform_0, window_bounds = array<i64: 1, 4, 256>}, {pipeline_mode = #tpu.pipeline_mode<synchronous>, transform_indices = @transform_1, window_bounds = array<i64: 256, 32>}, {pipeline_mode = #tpu.pipeline_mode<synchronous>, transform_indices = @transform_2, window_bounds = array<i64: 4, 32>}, {transform_indices = @transform_3, window_bounds = array<i64: 1, 4, 32>}]} {
    %c0 = arith.constant 0 : index
    %c0_0 = arith.constant 0 : index
    %0 = vector.load %arg2[%c0, %c0_0] : memref<256x32xbf16, #tpu.memory_space<vmem>>, vector<256x32xbf16>
    %c0_1 = arith.constant 0 : index
    %c0_2 = arith.constant 0 : index
    %1 = vector.load %arg3[%c0_1, %c0_2] : memref<4x32xbf16, #tpu.memory_space<vmem>>, vector<4x32xbf16>
    %2 = arith.extf %1 : vector<4x32xbf16> to vector<4x32xf32>
    %c0_3 = arith.constant 0 : index
    %c0_4 = arith.constant 0 : index
    %c0_5 = arith.constant 0 : index
    %3 = vector.load %arg1[%c0_3, %c0_4, %c0_5] : memref<1x4x256xbf16, #tpu.memory_space<vmem>>, vector<1x4x256xbf16>
    %4 = vector.shape_cast %3 : vector<1x4x256xbf16> to vector<4x256xbf16>
    %cst = arith.constant dense<0.000000e+00> : vector<4x32xf32>
    %5 = tpu.matmul %4, %0, %cst {dimension_numbers = #tpu.dot_dimension_numbers<[1], [0], [0], [1], [0, 0, 1, 1], [], []>} : vector<4x256xbf16>, vector<256x32xbf16>, vector<4x32xf32> -> vector<4x32xf32>
    %6 = arith.addf %5, %2 : vector<4x32xf32>
    %c0_6 = arith.constant 0 : index
    %c0_7 = arith.constant 0 : index
    %c0_8 = arith.constant 0 : index
    %7 = vector.load %arg4[%c0_6, %c0_7, %c0_8] : memref<1x4x32xf32, #tpu.memory_space<vmem>>, vector<1x4x32xf32>
    %8 = vector.shape_cast %7 : vector<1x4x32xf32> to vector<4x32xf32>
    %9 = vector.shape_cast %6 : vector<4x32xf32> to vector<1x4x32xf32>
    tpu.vector_store %arg4[%c0_6, %c0_7, %c0_8], %9 {strides = array<i32>} : memref<1x4x32xf32, #tpu.memory_space<vmem>>, vector<1x4x32xf32>,
    return
  }
  func.func @transform_0(%arg0: i32) -> (i32, i32, i32) {
    %c0_i32 = arith.constant 0 : i32
    %c0_i32_0 = arith.constant 0 : i32
    %c0_i32_1 = arith.constant 0 : i32
    return %arg0, %c0_i32, %c0_i32_0 : i32, i32, i32
  }
  func.func @transform_1(%arg0: i32) -> (i32, i32) {
    %c0_i32 = arith.constant 0 : i32
    %c0_i32_0 = arith.constant 0 : i32
    %c0_i32_1 = arith.constant 0 : i32
    return %c0_i32, %c0_i32_0 : i32, i32
  }
  func.func @transform_2(%arg0: i32) -> (i32, i32) {
    %c0_i32 = arith.constant 0 : i32
    %c0_i32_0 = arith.constant 0 : i32
    %c0_i32_1 = arith.constant 0 : i32
    return %c0_i32, %c0_i32_0 : i32, i32
  }
  func.func @transform_3(%arg0: i32) -> (i32, i32, i32) {
    %c0_i32 = arith.constant 0 : i32
    %c0_i32_0 = arith.constant 0 : i32
    %c0_i32_1 = arith.constant 0 : i32
    return %arg0, %c0_i32, %c0_i32_0 : i32, i32, i32
  }
}

</mosaic_0001>

<llo_original>
// kernel: _lambda_.1
$region0: #{_lambda_.1}
  #allocation0 [shape = 'u32[]', space=smem, size = 0x4, offset = 0x4, fixed_abs, tag = 'smem constant byte address 0x4 - core index']
  #allocation1 [shape = 'u32[144,128]{1,0:T(1,128)}', space=vmem, size = 0x12000, scoped, tag = 'internal scratch']
  %s0 = inlined_call_operand.vmem [shape: bf16[2,4,256], index: 0, kind: input, shape index: {}]
  %s1 = inlined_call_operand.vmem [shape: bf16[256,32], index: 1, kind: input, shape index: {}]
  %s2 = inlined_call_operand.vmem [shape: bf16[4,32], index: 2, kind: input, shape index: {}]
  %s3 = inlined_call_operand.hbm [shape: f32[2,4,32], index: 3, kind: output, shape index: {}]
  %s4 = sld [smem:[#allocation0]]
  $region45: #{_lambda_.1} parent=0
    _
  %s6 = ssub.s32 1, %s4
  %s7 = scalar_select 0, %s6, %s4
  $region1: #{_lambda_.1} parent=0
    #allocation2 [shape = 'u8[4096]{0}', space=vmem, size = 0x1000, scoped, tag = 'output window, operand 0']
    #allocation3 [shape = 's32[2]{0}', space=sflag, size = 0x8, scoped, tag = 'scoped memory for _lambda_.1']
    %8 = vsyncpa [#allocation3], 0
    %s9 = scalar_lea.sflag [#allocation3], 1
    %10 = vsyncpa %s9, 0
    loop: start=0, step=1, limit=4
    $region2: #{_lambda_.1} parent=1 // loop_pre_header
      _
    $region3: #{_lambda_.1} parent=1 // loop_header
      %s12 = sphi 0, %s16
      %p13 = scmp.ge.s32.totalorder %s12, 4
      %s22 = sphi 0, %s24
      %s25 = sphi 0, %s22
      %s26 = sphi 0, %s25
      %s42 = sphi 0, %s26
      %s46 = sphi 0, %s46
      %s48 = sphi 0, %s46
      %s49 = sphi 0, %s48
      %s63 = sphi 0, %s49
      %s67 = sphi 0, %s67
      %s69 = sphi 0, %s67
      %s70 = sphi 0, %s69
      %s84 = sphi 0, %s70
      %s90 = sphi 0, %s92
      %s93 = sphi 0, %s90
      %s94 = sphi 0, %s93
      %s110 = sphi 0, %s94
    $region4: #{_lambda_.1} parent=1 // loop_header_branch
      %15 = sbr.rel (%p13) target = $region8
    $region5: #{_lambda_.1} parent=1 // loop_body
      %s17 = ssub.s32 %s12, 1
      %s18 = ssub.s32 %s12, 2
      %s19 = sadd.s32 %s12, 1
      %s20 = ssub.s32 %s12, %s19
      %p21 = scmp.eq.s32.totalorder %s20, 0
      %s23 = sadd.s32 %s22, 1
      %s24 = scalar_select %p21, %s22, %s23
      %p27 = pneg %p21
      %p28 = scmp.eq.s32.totalorder %s12, 1
      %p29 = por %p27, %p28
      %p30 = scmp.ne.s32.totalorder %s22, %s25
      %p31 = scmp.eq.s32.totalorder %s12, 0
      %p32 = por %p30, %p31
      %p33 = scmp.ne.s32.totalorder %s22, %s25
      %p34 = scmp.eq.s32.totalorder %s17, 1
      %p35 = por %p33, %p34
      %p36 = scmp.ne.s32.totalorder %s25, %s26
      %p37 = scmp.eq.s32.totalorder %s17, 0
      %p38 = por %p36, %p37
      %p39 = scmp.ne.s32.totalorder %s25, %s26
      %p40 = scmp.eq.s32.totalorder %s18, 1
      %p41 = por %p39, %p40
      %p43 = scmp.ne.s32.totalorder %s26, %s42
      %p44 = scmp.eq.s32.totalorder %s18, 0
      %p45 = por %p43, %p44
      %s47 = sadd.s32 %s46, 1
      %p50 = scmp.eq.s32.totalorder %s12, 1
      %p51 = scmp.ne.s32.totalorder %s46, %s48
      %p52 = scmp.eq.s32.totalorder %s12, 0
      %p53 = por %p51, %p52
      %p54 = scmp.ne.s32.totalorder %s46, %s48
      %p55 = scmp.eq.s32.totalorder %s17, 1
      %p56 = por %p54, %p55
      %p57 = scmp.ne.s32.totalorder %s48, %s49
      %p58 = scmp.eq.s32.totalorder %s17, 0
      %p59 = por %p57, %p58
      %p60 = scmp.ne.s32.totalorder %s48, %s49
      %p61 = scmp.eq.s32.totalorder %s18, 1
      %p62 = por %p60, %p61
      %p64 = scmp.ne.s32.totalorder %s49, %s63
      %p65 = scmp.eq.s32.totalorder %s18, 0
      %p66 = por %p64, %p65
      %s68 = sadd.s32 %s67, 1
      %p71 = scmp.eq.s32.totalorder %s12, 1
      %p72 = scmp.ne.s32.totalorder %s67, %s69
      %p73 = scmp.eq.s32.totalorder %s12, 0
      %p74 = por %p72, %p73
      %p75 = scmp.ne.s32.totalorder %s67, %s69
      %p76 = scmp.eq.s32.totalorder %s17, 1
      %p77 = por %p75, %p76
      %p78 = scmp.ne.s32.totalorder %s69, %s70
      %p79 = scmp.eq.s32.totalorder %s17, 0
      %p80 = por %p78, %p79
      %p81 = scmp.ne.s32.totalorder %s69, %s70
      %p82 = scmp.eq.s32.totalorder %s18, 1
      %p83 = por %p81, %p82
      %p85 = scmp.ne.s32.totalorder %s70, %s84
      %p86 = scmp.eq.s32.totalorder %s18, 0
      %p87 = por %p85, %p86
      %s88 = ssub.s32 %s12, %s19
      %p89 = scmp.eq.s32.totalorder %s88, 0
      %s91 = sadd.s32 %s90, 1
      %s92 = scalar_select %p89, %s90, %s91
      %p95 = pneg %p89
      %p96 = scmp.eq.s32.totalorder %s12, 1
      %p97 = por %p95, %p96
      %p98 = scmp.ne.s32.totalorder %s90, %s93
      %p99 = scmp.eq.s32.totalorder %s12, 0
      %p100 = por %p98, %p99
      %p101 = scmp.ne.s32.totalorder %s90, %s93
      %p102 = scmp.eq.s32.totalorder %s17, 1
      %p103 = por %p101, %p102
      %p104 = scmp.ne.s32.totalorder %s93, %s94
      %p105 = scmp.eq.s32.totalorder %s17, 0
      %p106 = por %p104, %p105
      %p107 = scmp.ne.s32.totalorder %s93, %s94
      %p108 = scmp.eq.s32.totalorder %s18, 1
      %p109 = por %p107, %p108
      %p111 = scmp.ne.s32.totalorder %s94, %s110
      %p112 = scmp.eq.s32.totalorder %s18, 0
      %p113 = por %p111, %p112
      %p114 = scmp.le.s32.totalorder 1, %s12
      %p115 = scmp.lt.s32.totalorder %s12, 3
      %p116 = pnand %p114, %p115
      %p117 = pneg %p116
      // Predicated region
      $region9: #{_lambda_.1} parent=5 // pred_check
        _
      $region10: #{_lambda_.1} parent=5 // pred_check_branch
        %119 = sbr.rel (%p116) target = $region12
      $region11: #{_lambda_.1} parent=5 // pred_region
        %s120 = ssub.s32 %s12, 1
        // Predicated region
        $region13: #{_lambda_.1} parent=11 // pred_check
          %p121 = pneg %p59
        $region14: #{_lambda_.1} parent=11 // pred_check_branch
          %123 = sbr.rel (%p121) target = $region16
        $region15: #{_lambda_.1} parent=11 // pred_region
          _
        $region16: #{_lambda_.1} parent=11 // pred_fallthru
          _
        // Predicated region
        $region17: #{_lambda_.1} parent=11 // pred_check
          %p124 = pneg %p80
        $region18: #{_lambda_.1} parent=11 // pred_check_branch
          %126 = sbr.rel (%p124) target = $region20
        $region19: #{_lambda_.1} parent=11 // pred_region
          _
        $region20: #{_lambda_.1} parent=11 // pred_fallthru
          _
      $region12: #{_lambda_.1} parent=5 // pred_fallthru
        _
      %p127 = scmp.lt.s32.totalorder %s12, 2
      // Predicated region
      $region21: #{_lambda_.1} parent=5 // pred_check
        %p128 = pneg %p127
      $region22: #{_lambda_.1} parent=5 // pred_check_branch
        %130 = sbr.rel (%p128) target = $region24
      $region23: #{_lambda_.1} parent=5 // pred_region
        // Predicated region
        $region25: #{_lambda_.1} parent=23 // pred_check
          %p131 = pneg %p32
        $region26: #{_lambda_.1} parent=23 // pred_check_branch
          %133 = sbr.rel (%p131) target = $region28
        $region27: #{_lambda_.1} parent=23 // pred_region
          %p134 = scmp.lt.s32.totalorder %s12, 1
          %s135 = scalar_select %p134, %s12, 1
          %s136 = smul.addr %s135, 2
          %s137 = smul.addr %s136, 2
          %s138 = scalar_lea.vmem %s0, %s137
        $region28: #{_lambda_.1} parent=23 // pred_fallthru
          _
      $region24: #{_lambda_.1} parent=5 // pred_fallthru
        _
      %p139 = scmp.le.s32.totalorder 1, %s12
      %p140 = scmp.lt.s32.totalorder %s12, 3
      %p141 = pnand %p139, %p140
      %p142 = pneg %p141
      // Predicated region
      $region29: #{_lambda_.1} parent=5 // pred_check
        _
      $region30: #{_lambda_.1} parent=5 // pred_check_branch
        %144 = sbr.rel (%p141) target = $region32
      $region31: #{_lambda_.1} parent=5 // pred_region
        %s145 = ssub.s32 %s12, 1
        %p146 = scmp.lt.s32.totalorder %s17, 1
        %s147 = scalar_select %p146, %s17, 1
        %s148 = smul.addr %s147, 2
        %s149 = smul.addr %s148, 2
        %s150 = scalar_lea.vmem %s0, %s149
        %p151 = pneg %p38
        %p152 = pneg %p35
        %p153 = pneg %p59
        %p154 = pneg %p56
        %p155 = pneg %p80
        %p156 = pneg %p77
        %p157 = pneg %p106
        %p158 = pneg %p103
        %s159 = sand.u32 %s93, 1
        %s160 = scalar_lea.sflag [#allocation3], %s159
        %s161 = sand.u32 %s93, 1
        %s162 = smul.addr %s161, 4
        %s163 = scalar_lea.vmem [#allocation2], %s162
        %p164 = scmp.lt.s32.totalorder %s17, 1
        %s165 = scalar_select %p164, %s17, 1
        %s166 = smul.addr %s165, 2
        %s167 = smul.addr %s166, 2
        %s168 = scalar_lea.vmem %s0, %s167
        %v170 = vld [vmem:[%s1] sm:$0xf]
        %v171 = vld [vmem:[%s1 + $0x4] sm:$0xf]
        %v172 = vld [vmem:[%s1 + $0x8] sm:$0xf]
        %v173 = vld [vmem:[%s1 + $0xc] sm:$0xf]
        %v174 = vld [vmem:[%s1 + $0x10] sm:$0xf]
        %v175 = vld [vmem:[%s1 + $0x14] sm:$0xf]
        %v176 = vld [vmem:[%s1 + $0x18] sm:$0xf]
        %v177 = vld [vmem:[%s1 + $0x1c] sm:$0xf]
        %v178 = vld [vmem:[%s1 + $0x20] sm:$0xf]
        %v179 = vld [vmem:[%s1 + $0x24] sm:$0xf]
        %v180 = vld [vmem:[%s1 + $0x28] sm:$0xf]
        %v181 = vld [vmem:[%s1 + $0x2c] sm:$0xf]
        %v182 = vld [vmem:[%s1 + $0x30] sm:$0xf]
        %v183 = vld [vmem:[%s1 + $0x34] sm:$0xf]
        %v184 = vld [vmem:[%s1 + $0x38] sm:$0xf]
        %v185 = vld [vmem:[%s1 + $0x3c] sm:$0xf]
        %v186 = vld [vmem:[%s1 + $0x40] sm:$0xf]
        %v187 = vld [vmem:[%s1 + $0x44] sm:$0xf]
        %v188 = vld [vmem:[%s1 + $0x48] sm:$0xf]
        %v189 = vld [vmem:[%s1 + $0x4c] sm:$0xf]
        %v190 = vld [vmem:[%s1 + $0x50] sm:$0xf]
        %v191 = vld [vmem:[%s1 + $0x54] sm:$0xf]
        %v192 = vld [vmem:[%s1 + $0x58] sm:$0xf]
        %v193 = vld [vmem:[%s1 + $0x5c] sm:$0xf]
        %v194 = vld [vmem:[%s1 + $0x60] sm:$0xf]
        %v195 = vld [vmem:[%s1 + $0x64] sm:$0xf]
        %v196 = vld [vmem:[%s1 + $0x68] sm:$0xf]
        %v197 = vld [vmem:[%s1 + $0x6c] sm:$0xf]
        %v198 = vld [vmem:[%s1 + $0x70] sm:$0xf]
        %v199 = vld [vmem:[%s1 + $0x74] sm:$0xf]
        %v200 = vld [vmem:[%s1 + $0x78] sm:$0xf]
        %v201 = vld [vmem:[%s1 + $0x7c] sm:$0xf]
        %v202 = vld [vmem:[%s2] sm:$0x3]
        %v203 = vunpack.c.l.bf16 %v202
        %v204 = vld [vmem:[%s168] sm:$0xf]
        %v207 = vunpack.c.l.s4 1983009808
        %v208 = vunpack.c.0.s8 %v207
        %v209 = vlaneseq
        %v210 = vshrl.u32 %v209, 7
        %v211 = vsub.s32 %v208, %v210
        %v212 = vrot.slane %v204, %v211
        %v213 = vcombine.high %v212, %v212
        %v248 = vunpack.c.l.b16 %v170
        %v249 = vunpack.c.l.b16 %v171
        %v250 = vunpack.c.l.b16 %v172
        %v251 = vunpack.c.l.b16 %v173
        %v252 = vunpack.c.l.b16 %v174
        %v253 = vunpack.c.l.b16 %v175
        %v254 = vunpack.c.l.b16 %v176
        %v255 = vunpack.c.l.b16 %v177
        %v256 = vunpack.c.l.b16 %v178
        %v257 = vunpack.c.l.b16 %v179
        %v258 = vunpack.c.l.b16 %v180
        %v259 = vunpack.c.l.b16 %v181
        %v260 = vunpack.c.l.b16 %v182
        %v261 = vunpack.c.l.b16 %v183
        %v262 = vunpack.c.l.b16 %v184
        %v263 = vunpack.c.l.b16 %v185
        %v264 = vunpack.c.l.b16 %v186
        %v265 = vunpack.c.l.b16 %v187
        %v266 = vunpack.c.l.b16 %v188
        %v267 = vunpack.c.l.b16 %v189
        %v268 = vunpack.c.l.b16 %v190
        %v269 = vunpack.c.l.b16 %v191
        %v270 = vunpack.c.l.b16 %v192
        %v271 = vunpack.c.l.b16 %v193
        %v272 = vunpack.c.l.b16 %v194
        %v273 = vunpack.c.l.b16 %v195
        %v274 = vunpack.c.l.b16 %v196
        %v275 = vunpack.c.l.b16 %v197
        %v276 = vunpack.c.l.b16 %v198
        %v277 = vunpack.c.l.b16 %v199
        %v278 = vunpack.c.l.b16 %v200
        %v279 = vunpack.c.l.b16 %v201
        %v280 = vpack.c.b16 %v249, %v248
        %v281 = vpack.c.b16 %v251, %v250
        %v282 = vpack.c.b16 %v253, %v252
        %v283 = vpack.c.b16 %v255, %v254
        %v284 = vpack.c.b16 %v257, %v256
        %v285 = vpack.c.b16 %v259, %v258
        %v286 = vpack.c.b16 %v261, %v260
        %v287 = vpack.c.b16 %v263, %v262
        %v288 = vpack.c.b16 %v265, %v264
        %v289 = vpack.c.b16 %v267, %v266
        %v290 = vpack.c.b16 %v269, %v268
        %v291 = vpack.c.b16 %v271, %v270
        %v292 = vpack.c.b16 %v273, %v272
        %v293 = vpack.c.b16 %v275, %v274
        %v294 = vpack.c.b16 %v277, %v276
        %v295 = vpack.c.b16 %v279, %v278
        %312 = vmatprep.subr.bf16.mxu0 0
        %313 = vmatpush1.bf16.msra.mxu0 %v287
        %314 = vmatprep.subr.bf16.mxu0 0
        %315 = vmatpush1.bf16.msra.mxu0 %v286
        %316 = vmatprep.subr.bf16.mxu0 0
        %317 = vmatpush1.bf16.msra.mxu0 %v285
        %318 = vmatprep.subr.bf16.mxu0 0
        %319 = vmatpush1.bf16.msra.mxu0 %v284
        %320 = vmatprep.subr.bf16.mxu0 0
        %321 = vmatpush1.bf16.msra.mxu0 %v283
        %322 = vmatprep.subr.bf16.mxu0 0
        %323 = vmatpush1.bf16.msra.mxu0 %v282
        %324 = vmatprep.subr.bf16.mxu0 0
        %325 = vmatpush1.bf16.msra.mxu0 %v281
        %326 = vmatprep.subr.bf16.mxu0 0
        %327 = vmatpush1.bf16.msra.mxu0 %v280
        %328 = vmatprep.subr.bf16.mxu0 0
        %329 = vmatpush2.bf16.msra.mxu0 %v295
        %330 = vmatprep.subr.bf16.mxu0 0
        %331 = vmatpush2.bf16.msra.mxu0 %v294
        %332 = vmatprep.subr.bf16.mxu0 0
        %333 = vmatpush2.bf16.msra.mxu0 %v293
        %334 = vmatprep.subr.bf16.mxu0 0
        %335 = vmatpush2.bf16.msra.mxu0 %v292
        %336 = vmatprep.subr.bf16.mxu0 0
        %337 = vmatpush2.bf16.msra.mxu0 %v291
        %338 = vmatprep.subr.bf16.mxu0 0
        %339 = vmatpush2.bf16.msra.mxu0 %v290
        %340 = vmatprep.subr.bf16.mxu0 0
        %341 = vmatpush2.bf16.msra.mxu0 %v289
        %342 = vmatprep.subr.bf16.mxu0 0
        %343 = vmatpush2.bf16.msra.mxu0 %v288
        %344 = vmatprep.mubr.bf16.mxu0 %v213
        %345 = vmatmul.mubr.bf16.gmra.mxu0 %v212
        %v346 = vpop.f32.mrf.mxu0
        %v347 = vadd.f32 %v203, %v346
        %v348 = vpop.f32.mrf.mxu0
        %v349 = vpop.f32.mrf.mxu0
        %v350 = vpop.f32.mrf.mxu0
        %351 = vdwg.mxu0
        %vm352 = vcmask 257024
        %353 = vst.msk [vmem:[%s163] sm:$0xf] %vm352, %v347
        %s354 = sand.u32 %s93, 1
        %s355 = scalar_lea.sflag [#allocation3], %s354
        %s356 = sand.u32 %s93, 1
        %s357 = smul.addr %s356, 4
        %s358 = scalar_lea.vmem [#allocation2], %s357
        // Predicated region
        $region33: #{_lambda_.1} parent=31 // pred_check
          %p359 = pneg %p103
        $region34: #{_lambda_.1} parent=31 // pred_check_branch
          %361 = sbr.rel (%p359) target = $region36
        $region35: #{_lambda_.1} parent=31 // pred_region
          %s363 = ssub.s32 64, 64
          %364 = vsyncadd %s355, %s363
          %s365 = smul.addr %s17, 64
          %s366 = scalar_lea.hbm %s3, %s365
          %s368 = sshll.u32 %s358, 4
          %s369 = int_to_ptr.vmem [resolvable:$true] %s368
          %371 = dma.vmem_to_hbm [thread:$0]  %s369, 64, %s366, %s355
        $region36: #{_lambda_.1} parent=31 // pred_fallthru
          _
      $region32: #{_lambda_.1} parent=5 // pred_fallthru
        _
      %p372 = scmp.le.s32.totalorder 2, %s12
      // Predicated region
      $region37: #{_lambda_.1} parent=5 // pred_check
        %p373 = pneg %p372
      $region38: #{_lambda_.1} parent=5 // pred_check_branch
        %375 = sbr.rel (%p373) target = $region40
      $region39: #{_lambda_.1} parent=5 // pred_region
        %s376 = ssub.s32 %s12, 2
        // Predicated region
        $region41: #{_lambda_.1} parent=39 // pred_check
          %p377 = pneg %p109
        $region42: #{_lambda_.1} parent=39 // pred_check_branch
          %379 = sbr.rel (%p377) target = $region44
        $region43: #{_lambda_.1} parent=39 // pred_region
          %s380 = sand.u32 %s94, 1
          %s381 = scalar_lea.sflag [#allocation3], %s380
          %s382 = sand.u32 %s94, 1
          %s383 = smul.addr %s382, 4
          %s384 = scalar_lea.vmem [#allocation2], %s383
          %385 = dma.done %s381, 64
        $region44: #{_lambda_.1} parent=39 // pred_fallthru
          _
      $region40: #{_lambda_.1} parent=5 // pred_fallthru
        _
    $region6: #{_lambda_.1} parent=1 // loop_footer
      %s16 = sadd.s32 1, %s12
    $region7: #{_lambda_.1} parent=1 // loop_footer_branch
      %11 = sbr.rel target = $region3
    $region8: #{_lambda_.1} parent=1 // loop_exit
      _
    %386 = vsyncpa [#allocation3], 1
    %s387 = scalar_lea.sflag [#allocation3], 1
    %388 = vsyncpa %s387, 1

</llo_original>
